<compile_context>
chip_gen: v7x
topology: tpu7x:2x2x1
jax: 0.10.0
libtpu: 0.0.40
codegen_flags: <defaults>
</compile_context>

<pallas_src>
import jax
import jax.numpy as jnp
from jax.experimental import pallas as pl
from jax.experimental.pallas import tpu as pltpu


def _round_up(x, m):
    return ((x + m - 1) // m) * m


def _layout(state_dim, action_dim, hidden_dim):
    """Static layout of the packed parameter slab (row offsets / lane widths)."""
    C = _round_up(2 * hidden_dim, 128)   # encoder concat width
    Ch = _round_up(hidden_dim, 128)      # predictor hidden width
    Co = _round_up(state_dim, 128)       # output width
    Cs = max(C, Co)                      # slab lane width
    RS = _round_up(state_dim, 8)         # padded state width (sublane multiple)
    RA = _round_up(action_dim, 8)        # padded action width
    o1s = 0                  # W1 state half   (RS, C)
    o1a = RS                 # W1 action half  (RA, C)
    o2 = RS + RA             # W2 block-diag   (C, C)
    o3 = o2 + C              # W3 (= wp1 pad)  (C, Ch)
    o4 = o3 + C              # W4 (= wp2 pad)  (Ch, Co)
    ob = o4 + Ch             # 4 bias rows (padded to 8 rows)
    R = ob + 8
    return dict(C=C, Ch=Ch, Co=Co, Cs=Cs, RS=RS, RA=RA,
                o1s=o1s, o1a=o1a, o2=o2, o3=o3, o4=o4, ob=ob, R=R)


def _make_dynamics_kernel(layout):
    C, Ch, Co = layout["C"], layout["Ch"], layout["Co"]
    RS, RA = layout["RS"], layout["RA"]
    o1s, o1a, o2, o3, o4, ob = (layout["o1s"], layout["o1a"], layout["o2"],
                                layout["o3"], layout["o4"], layout["ob"])

    def kernel(state_ref, action_ref, p_ref, out_ref):
        f32 = jnp.float32
        x_s = state_ref[...]                      # (TB, RS)
        x_a = action_ref[...]                     # (TB, RA)

        # Static, tile-aligned slices of the resident parameter slab.
        w1s = p_ref[o1s:o1s + RS, :C]             # (RS, C)
        w1a = p_ref[o1a:o1a + RA, :C]             # (RA, C)
        w2 = p_ref[o2:o2 + C, :C]                 # (C, C)  block-diag(ws2, wa2)
        w3 = p_ref[o3:o3 + C, :Ch]                # (C, Ch) wp1 padded
        w4 = p_ref[o4:o4 + Ch, :Co]               # (Ch, Co) wp2 padded
        b1 = p_ref[ob + 0:ob + 1, :C]             # (1, C)
        b2 = p_ref[ob + 1:ob + 2, :C]             # (1, C)
        b3 = p_ref[ob + 2:ob + 3, :Ch]            # (1, Ch)
        b4 = p_ref[ob + 3:ob + 4, :Co]            # (1, Co)

        # Layer 1 of both encoders (block-diag, split over the two inputs).
        h = jnp.maximum(
            jnp.dot(x_s, w1s, preferred_element_type=f32)
            + jnp.dot(x_a, w1a, preferred_element_type=f32)
            + b1, 0.0)
        # Layer 2 of both encoders (block-diag) -> equals concat(hs, ha).
        h = jnp.maximum(jnp.dot(h, w2, preferred_element_type=f32) + b2, 0.0)
        # Predictor layer 1 (2H -> H).
        h = jnp.maximum(jnp.dot(h, w3, preferred_element_type=f32) + b3, 0.0)
        # Predictor layer 2 (H -> state_dim), lane-dense padded output.
        out_ref[...] = (jnp.dot(h, w4, preferred_element_type=f32)
                        + b4).astype(out_ref.dtype)

    return kernel


def dynamics_model_forward(state, action, packed_params, layout, *,
                           block_batch=128):
    """state: (B, state_dim), action: (B, action_dim) -> (B, state_dim)."""
    B, S = state.shape
    A = action.shape[1]
    Co, Cs = layout["Co"], layout["Cs"]
    RS, RA, R = layout["RS"], layout["RA"], layout["R"]

    # Host-side layout plumbing: pad batch to a sublane multiple and the
    # feature axes to the packed widths (zeros contribute nothing).
    Bp = _round_up(B, 8)
    state_p = jnp.pad(state, ((0, Bp - B), (0, RS - S)))
    action_p = jnp.pad(action, ((0, Bp - B), (0, RA - A)))

    TB = min(block_batch, Bp)
    grid = (pl.cdiv(Bp, TB),)

    out_padded = pl.pallas_call(
        _make_dynamics_kernel(layout),
        out_shape=jax.ShapeDtypeStruct((Bp, Co), jnp.float32),
        grid=grid,
        in_specs=[
            pl.BlockSpec((TB, RS), lambda i: (i, 0)),
            pl.BlockSpec((TB, RA), lambda i: (i, 0)),
            # Constant block index -> params DMA'd once, resident across steps.
            pl.BlockSpec((R, Cs), lambda i: (0, 0)),
        ],
        out_specs=pl.BlockSpec((TB, Co), lambda i: (i, 0)),
        compiler_params=pltpu.CompilerParams(
            dimension_semantics=("parallel",)),
    )(state_p, action_p, packed_params)

    return out_padded[:B, :S]


def init_params(key, state_dim, action_dim, hidden_dim):
    """Per-layer params mimicking nn.Linear's U(-1/sqrt(fan_in), 1/sqrt(fan_in)).

    Weights are stored (in, out) so y = x @ W + b (== PyTorch's x @ W.T + b).
    """
    def linear(k, fan_in, fan_out):
        kw, kb = jax.random.split(k)
        bound = 1.0 / (fan_in ** 0.5)
        w = jax.random.uniform(kw, (fan_in, fan_out), jnp.float32, -bound, bound)
        b = jax.random.uniform(kb, (fan_out,), jnp.float32, -bound, bound)
        return w, b

    keys = jax.random.split(key, 6)
    ws1, bs1 = linear(keys[0], state_dim, hidden_dim)
    ws2, bs2 = linear(keys[1], hidden_dim, hidden_dim)
    wa1, ba1 = linear(keys[2], action_dim, hidden_dim)
    wa2, ba2 = linear(keys[3], hidden_dim, hidden_dim)
    wp1, bp1 = linear(keys[4], 2 * hidden_dim, hidden_dim)
    wp2, bp2 = linear(keys[5], hidden_dim, state_dim)
    return {"ws1": ws1, "bs1": bs1, "ws2": ws2, "bs2": bs2,
            "wa1": wa1, "ba1": ba1, "wa2": wa2, "ba2": ba2,
            "wp1": wp1, "bp1": bp1, "wp2": wp2, "bp2": bp2}


def pack_params(p, state_dim, action_dim, hidden_dim):
    """Pack all layers into one zero-padded (R, Cs) f32 slab (see _layout)."""
    S, A, H = state_dim, action_dim, hidden_dim
    lay = _layout(S, A, H)
    Cs, R = lay["Cs"], lay["R"]
    o1s, o1a, o2, o3, o4, ob = (lay["o1s"], lay["o1a"], lay["o2"],
                                lay["o3"], lay["o4"], lay["ob"])
    slab = jnp.zeros((R, Cs), jnp.float32)
    # Layer-1 halves: state half writes cols [0,H), action half cols [H,2H).
    slab = slab.at[o1s:o1s + S, 0:H].set(p["ws1"])
    slab = slab.at[o1a:o1a + A, H:2 * H].set(p["wa1"])
    # Layer-2 block-diagonal.
    slab = slab.at[o2:o2 + H, 0:H].set(p["ws2"])
    slab = slab.at[o2 + H:o2 + 2 * H, H:2 * H].set(p["wa2"])
    # Predictor layers.
    slab = slab.at[o3:o3 + 2 * H, 0:H].set(p["wp1"])
    slab = slab.at[o4:o4 + H, 0:S].set(p["wp2"])
    # Bias rows.
    slab = slab.at[ob + 0, 0:H].set(p["bs1"])
    slab = slab.at[ob + 0, H:2 * H].set(p["ba1"])
    slab = slab.at[ob + 1, 0:H].set(p["bs2"])
    slab = slab.at[ob + 1, H:2 * H].set(p["ba2"])
    slab = slab.at[ob + 2, 0:H].set(p["bp1"])
    slab = slab.at[ob + 3, 0:S].set(p["bp2"])
    return slab, lay


def reference_forward(state, action, p):
    """Plain-JAX reference mirroring the PyTorch forward."""
    relu = lambda x: jnp.maximum(x, 0.0)
    hs = relu(relu(state @ p["ws1"] + p["bs1"]) @ p["ws2"] + p["bs2"])
    ha = relu(relu(action @ p["wa1"] + p["ba1"]) @ p["wa2"] + p["ba2"])
    comb = jnp.concatenate([hs, ha], axis=1)
    h = relu(comb @ p["wp1"] + p["bp1"])
    return h @ p["wp2"] + p["bp2"]


if __name__ == "__main__":
    batch = 8
    state_dim = 24
    action_dim = 6
    hidden_dim = 32

    key = jax.random.PRNGKey(0)
    k_state, k_action, k_params = jax.random.split(key, 3)

    state = jax.random.normal(k_state, (batch, state_dim), jnp.float32)
    action = jax.random.normal(k_action, (batch, action_dim), jnp.float32)
    params = init_params(k_params, state_dim, action_dim, hidden_dim)
    slab, layout = pack_params(params, state_dim, action_dim, hidden_dim)

    fwd = jax.jit(lambda s, a, p: dynamics_model_forward(s, a, p, layout))
    out = jax.block_until_ready(fwd(state, action, slab))

    ref = reference_forward(state, action, params)
    assert out.shape == (batch, state_dim), out.shape
    assert jnp.allclose(out, ref, atol=1e-4, rtol=1e-4), "mismatch vs reference"

    print("KERNEL_OK")
</pallas_src>

<mosaic_0001>
module attributes {stable_mosaic.version = 11 : i64} {
  func.func @kernel(%arg0: i32, %arg1: memref<8x24xf32, #tpu.memory_space<vmem>>, %arg2: memref<8x8xf32, #tpu.memory_space<vmem>>, %arg3: memref<424x128xf32, #tpu.memory_space<vmem>>, %arg4: memref<8x128xf32, #tpu.memory_space<vmem>>) attributes {dimension_semantics = [#tpu.dimension_semantics<parallel>], iteration_bounds = array<i64: 1>, scalar_prefetch = 0 : i64, scratch_operands = 0 : i64, tpu.core_type = #tpu.core_type<tc>, window_params = [{transform_indices = @transform_0, window_bounds = array<i64: 8, 24>}, {transform_indices = @transform_1, window_bounds = array<i64: 8, 8>}, {pipeline_mode = #tpu.pipeline_mode<synchronous>, transform_indices = @transform_2, window_bounds = array<i64: 424, 128>}, {transform_indices = @transform_3, window_bounds = array<i64: 8, 128>}]} {
    %c0 = arith.constant 0 : index
    %c0_0 = arith.constant 0 : index
    %0 = vector.load %arg1[%c0, %c0_0] : memref<8x24xf32, #tpu.memory_space<vmem>>, vector<8x24xf32>
    %c0_1 = arith.constant 0 : index
    %c0_2 = arith.constant 0 : index
    %1 = vector.load %arg2[%c0_1, %c0_2] : memref<8x8xf32, #tpu.memory_space<vmem>>, vector<8x8xf32>
    %c0_3 = arith.constant 0 : index
    %c0_4 = arith.constant 0 : index
    %2 = vector.load %arg3[%c0_3, %c0_4] : memref<424x128xf32, #tpu.memory_space<vmem>>, vector<24x128xf32>
    %c24 = arith.constant 24 : index
    %c0_5 = arith.constant 0 : index
    %3 = vector.load %arg3[%c24, %c0_5] : memref<424x128xf32, #tpu.memory_space<vmem>>, vector<8x128xf32>
    %c32 = arith.constant 32 : index
    %c0_6 = arith.constant 0 : index
    %4 = vector.load %arg3[%c32, %c0_6] : memref<424x128xf32, #tpu.memory_space<vmem>>, vector<128x128xf32>
    %c160 = arith.constant 160 : index
    %c0_7 = arith.constant 0 : index
    %5 = vector.load %arg3[%c160, %c0_7] : memref<424x128xf32, #tpu.memory_space<vmem>>, vector<128x128xf32>
    %c288 = arith.constant 288 : index
    %c0_8 = arith.constant 0 : index
    %6 = vector.load %arg3[%c288, %c0_8] : memref<424x128xf32, #tpu.memory_space<vmem>>, vector<128x128xf32>
    %c416 = arith.constant 416 : index
    %c0_9 = arith.constant 0 : index
    %7 = vector.load %arg3[%c416, %c0_9] : memref<424x128xf32, #tpu.memory_space<vmem>>, vector<1x128xf32>
    %c417 = arith.constant 417 : index
    %c0_10 = arith.constant 0 : index
    %8 = vector.load %arg3[%c417, %c0_10] : memref<424x128xf32, #tpu.memory_space<vmem>>, vector<1x128xf32>
    %c418 = arith.constant 418 : index
    %c0_11 = arith.constant 0 : index
    %9 = vector.load %arg3[%c418, %c0_11] : memref<424x128xf32, #tpu.memory_space<vmem>>, vector<1x128xf32>
    %c419 = arith.constant 419 : index
    %c0_12 = arith.constant 0 : index
    %10 = vector.load %arg3[%c419, %c0_12] : memref<424x128xf32, #tpu.memory_space<vmem>>, vector<1x128xf32>
    %cst = arith.constant dense<0.000000e+00> : vector<8x128xf32>
    %11 = tpu.matmul %0, %2, %cst {dimension_numbers = #tpu.dot_dimension_numbers<[1], [0], [0], [1], [0, 0, 1, 1], [], []>} : vector<8x24xf32>, vector<24x128xf32>, vector<8x128xf32> -> vector<8x128xf32>
    %cst_13 = arith.constant dense<0.000000e+00> : vector<8x128xf32>
    %12 = tpu.matmul %1, %3, %cst_13 {dimension_numbers = #tpu.dot_dimension_numbers<[1], [0], [0], [1], [0, 0, 1, 1], [], []>} : vector<8x8xf32>, vector<8x128xf32>, vector<8x128xf32> -> vector<8x128xf32>
    %13 = arith.addf %11, %12 : vector<8x128xf32>
    %14 = vector.broadcast %7 : vector<1x128xf32> to vector<8x128xf32>
    %15 = arith.addf %13, %14 : vector<8x128xf32>
    %cst_14 = arith.constant 0.000000e+00 : f32
    %16 = vector.broadcast %cst_14 : f32 to vector<8x128xf32>
    %17 = arith.maximumf %15, %16 : vector<8x128xf32>
    %cst_15 = arith.constant dense<0.000000e+00> : vector<8x128xf32>
    %18 = tpu.matmul %17, %4, %cst_15 {dimension_numbers = #tpu.dot_dimension_numbers<[1], [0], [0], [1], [0, 0, 1, 1], [], []>} : vector<8x128xf32>, vector<128x128xf32>, vector<8x128xf32> -> vector<8x128xf32>
    %19 = vector.broadcast %8 : vector<1x128xf32> to vector<8x128xf32>
    %20 = arith.addf %18, %19 : vector<8x128xf32>
    %cst_16 = arith.constant 0.000000e+00 : f32
    %21 = vector.broadcast %cst_16 : f32 to vector<8x128xf32>
    %22 = arith.maximumf %20, %21 : vector<8x128xf32>
    %cst_17 = arith.constant dense<0.000000e+00> : vector<8x128xf32>
    %23 = tpu.matmul %22, %5, %cst_17 {dimension_numbers = #tpu.dot_dimension_numbers<[1], [0], [0], [1], [0, 0, 1, 1], [], []>} : vector<8x128xf32>, vector<128x128xf32>, vector<8x128xf32> -> vector<8x128xf32>
    %24 = vector.broadcast %9 : vector<1x128xf32> to vector<8x128xf32>
    %25 = arith.addf %23, %24 : vector<8x128xf32>
    %cst_18 = arith.constant 0.000000e+00 : f32
    %26 = vector.broadcast %cst_18 : f32 to vector<8x128xf32>
    %27 = arith.maximumf %25, %26 : vector<8x128xf32>
    %cst_19 = arith.constant dense<0.000000e+00> : vector<8x128xf32>
    %28 = tpu.matmul %27, %6, %cst_19 {dimension_numbers = #tpu.dot_dimension_numbers<[1], [0], [0], [1], [0, 0, 1, 1], [], []>} : vector<8x128xf32>, vector<128x128xf32>, vector<8x128xf32> -> vector<8x128xf32>
    %29 = vector.broadcast %10 : vector<1x128xf32> to vector<8x128xf32>
    %30 = arith.addf %28, %29 : vector<8x128xf32>
    %c0_20 = arith.constant 0 : index
    %c0_21 = arith.constant 0 : index
    %31 = vector.load %arg4[%c0_20, %c0_21] : memref<8x128xf32, #tpu.memory_space<vmem>>, vector<8x128xf32>
    tpu.vector_store %arg4[%c0_20, %c0_21], %30 {strides = array<i32>} : memref<8x128xf32, #tpu.memory_space<vmem>>, vector<8x128xf32>,
    return
  }
  func.func @transform_0(%arg0: i32) -> (i32, i32) {
    %c0_i32 = arith.constant 0 : i32
    %c0_i32_0 = arith.constant 0 : i32
    return %arg0, %c0_i32 : i32, i32
  }
  func.func @transform_1(%arg0: i32) -> (i32, i32) {
    %c0_i32 = arith.constant 0 : i32
    %c0_i32_0 = arith.constant 0 : i32
    return %arg0, %c0_i32 : i32, i32
  }
  func.func @transform_2(%arg0: i32) -> (i32, i32) {
    %c0_i32 = arith.constant 0 : i32
    %c0_i32_0 = arith.constant 0 : i32
    %c0_i32_1 = arith.constant 0 : i32
    return %c0_i32, %c0_i32_0 : i32, i32
  }
  func.func @transform_3(%arg0: i32) -> (i32, i32) {
    %c0_i32 = arith.constant 0 : i32
    %c0_i32_0 = arith.constant 0 : i32
    return %arg0, %c0_i32 : i32, i32
  }
}

</mosaic_0001>

<llo_original>
// kernel: _lambda_.1
$region0: #{_lambda_.1}
  #allocation0 [shape = 'u32[]', space=smem, size = 0x4, offset = 0x4, fixed_abs, tag = 'smem constant byte address 0x4 - core index']
  #allocation1 [shape = 'u32[144,128]{1,0:T(1,128)}', space=vmem, size = 0x12000, scoped, tag = 'internal scratch']
  %s0 = inlined_call_operand.vmem [shape: f32[8,24], index: 0, kind: input, shape index: {}]
  %s1 = inlined_call_operand.vmem [shape: f32[8,8], index: 1, kind: input, shape index: {}]
  %s2 = inlined_call_operand.hbm [shape: f32[424,128], index: 2, kind: input, shape index: {}]
  %s3 = inlined_call_operand.hbm [shape: f32[8,128], index: 3, kind: output, shape index: {}]
  %s4 = sld [smem:[#allocation0]]
  $region26: #{_lambda_.1} parent=0
    _
  %s6 = ssub.s32 1, %s4
  %s7 = scalar_select 0, %s6, %s4
  $region1: #{_lambda_.1} parent=0
    #allocation2 [shape = 'u8[217088]{0}', space=vmem, size = 0x35000, scoped, tag = 'input window, operand 2, single buffered']
    #allocation3 [shape = 's32[1]{0}', space=sflag, size = 0x4, scoped, tag = 'scoped memory for _lambda_.1']
    #allocation4 [shape = 's32[1]{0}', space=sflag, size = 0x4, scoped, tag = 'scoped memory for _lambda_.1']
    #allocation5 [shape = 'u8[4096]{0}', space=vmem, size = 0x1000, scoped, tag = 'output window, operand 0, single buffered']
    %8 = vsyncpa [#allocation3], 0
    %9 = vsyncpa [#allocation4], 0
    // Predicated region
    $region2: #{_lambda_.1} parent=1 // pred_check
      _
    $region3: #{_lambda_.1} parent=1 // pred_check_branch
      %11 = sbr.rel (0) target = $region5
    $region4: #{_lambda_.1} parent=1 // pred_region
      _
    $region5: #{_lambda_.1} parent=1 // pred_fallthru
      _
    // Predicated region
    $region6: #{_lambda_.1} parent=1 // pred_check
      _
    $region7: #{_lambda_.1} parent=1 // pred_check_branch
      %13 = sbr.rel (0) target = $region9
    $region8: #{_lambda_.1} parent=1 // pred_region
      _
    $region9: #{_lambda_.1} parent=1 // pred_fallthru
      _
    // Predicated region
    $region10: #{_lambda_.1} parent=1 // pred_check
      _
    $region11: #{_lambda_.1} parent=1 // pred_check_branch
      %15 = sbr.rel (0) target = $region13
    $region12: #{_lambda_.1} parent=1 // pred_region
      %s17 = ssub.s32 6784, 6784
      %18 = vsyncadd [#allocation3], %s17
      %s19 = sshll.u32 [#allocation2], 4
      %s20 = int_to_ptr.vmem [resolvable:$true] %s19
      %25 = dma.hbm_to_vmem [thread:$0]  %s2, 6784, %s20, [#allocation3], 128, 128, 8
    $region13: #{_lambda_.1} parent=1 // pred_fallthru
      _
    // Predicated region
    $region14: #{_lambda_.1} parent=1 // pred_check
      _
    $region15: #{_lambda_.1} parent=1 // pred_check_branch
      %27 = sbr.rel (0) target = $region17
    $region16: #{_lambda_.1} parent=1 // pred_region
      %28 = dma.done [#allocation3], 6784
    $region17: #{_lambda_.1} parent=1 // pred_fallthru
      _
    %v29 = vld [vmem:[%s0] sm:$0xff]
    %v30 = vld [vmem:[%s1] sm:$0xff]
    %v31 = vld [vmem:[#allocation2] sm:$0xff]
    %v32 = vld [vmem:[#allocation2 + $0x8] sm:$0xff]
    %v33 = vld [vmem:[#allocation2 + $0x10] sm:$0xff]
    %v34 = vld [vmem:[#allocation2 + $0x18] sm:$0xff]
    %v35 = vld [vmem:[#allocation2 + $0x20] sm:$0xff]
    %v36 = vld [vmem:[#allocation2 + $0x28] sm:$0xff]
    %v37 = vld [vmem:[#allocation2 + $0x30] sm:$0xff]
    %v38 = vld [vmem:[#allocation2 + $0x38] sm:$0xff]
    %v39 = vld [vmem:[#allocation2 + $0x40] sm:$0xff]
    %v40 = vld [vmem:[#allocation2 + $0x48] sm:$0xff]
    %v41 = vld [vmem:[#allocation2 + $0x50] sm:$0xff]
    %v42 = vld [vmem:[#allocation2 + $0x58] sm:$0xff]
    %v43 = vld [vmem:[#allocation2 + $0x60] sm:$0xff]
    %v44 = vld [vmem:[#allocation2 + $0x68] sm:$0xff]
    %v45 = vld [vmem:[#allocation2 + $0x70] sm:$0xff]
    %v46 = vld [vmem:[#allocation2 + $0x78] sm:$0xff]
    %v47 = vld [vmem:[#allocation2 + $0x80] sm:$0xff]
    %v48 = vld [vmem:[#allocation2 + $0x88] sm:$0xff]
    %v49 = vld [vmem:[#allocation2 + $0x90] sm:$0xff]
    %v50 = vld [vmem:[#allocation2 + $0x98] sm:$0xff]
    %v51 = vld [vmem:[#allocation2 + $0xa0] sm:$0xff]
    %v52 = vld [vmem:[#allocation2 + $0xa8] sm:$0xff]
    %v53 = vld [vmem:[#allocation2 + $0xb0] sm:$0xff]
    %v54 = vld [vmem:[#allocation2 + $0xb8] sm:$0xff]
    %v55 = vld [vmem:[#allocation2 + $0xc0] sm:$0xff]
    %v56 = vld [vmem:[#allocation2 + $0xc8] sm:$0xff]
    %v57 = vld [vmem:[#allocation2 + $0xd0] sm:$0xff]
    %v58 = vld [vmem:[#allocation2 + $0xd8] sm:$0xff]
    %v59 = vld [vmem:[#allocation2 + $0xe0] sm:$0xff]
    %v60 = vld [vmem:[#allocation2 + $0xe8] sm:$0xff]
    %v61 = vld [vmem:[#allocation2 + $0xf0] sm:$0xff]
    %v62 = vld [vmem:[#allocation2 + $0xf8] sm:$0xff]
    %v63 = vld [vmem:[#allocation2 + $0x100] sm:$0xff]
    %v64 = vld [vmem:[#allocation2 + $0x108] sm:$0xff]
    %v65 = vld [vmem:[#allocation2 + $0x110] sm:$0xff]
    %v66 = vld [vmem:[#allocation2 + $0x118] sm:$0xff]
    %v67 = vld [vmem:[#allocation2 + $0x120] sm:$0xff]
    %v68 = vld [vmem:[#allocation2 + $0x128] sm:$0xff]
    %v69 = vld [vmem:[#allocation2 + $0x130] sm:$0xff]
    %v70 = vld [vmem:[#allocation2 + $0x138] sm:$0xff]
    %v71 = vld [vmem:[#allocation2 + $0x140] sm:$0xff]
    %v72 = vld [vmem:[#allocation2 + $0x148] sm:$0xff]
    %v73 = vld [vmem:[#allocation2 + $0x150] sm:$0xff]
    %v74 = vld [vmem:[#allocation2 + $0x158] sm:$0xff]
    %v75 = vld [vmem:[#allocation2 + $0x160] sm:$0xff]
    %v76 = vld [vmem:[#allocation2 + $0x168] sm:$0xff]
    %v77 = vld [vmem:[#allocation2 + $0x170] sm:$0xff]
    %v78 = vld [vmem:[#allocation2 + $0x178] sm:$0xff]
    %v79 = vld [vmem:[#allocation2 + $0x180] sm:$0xff]
    %v80 = vld [vmem:[#allocation2 + $0x188] sm:$0xff]
    %v81 = vld [vmem:[#allocation2 + $0x190] sm:$0xff]
    %v82 = vld [vmem:[#allocation2 + $0x198] sm:$0xff]
    %v83 = vld [vmem:[#allocation2 + $0x1a0] sm:$0x1]
    %v84 = vld [vmem:[#allocation2 + $0x1a1] sm:$0x1]
    %v85 = vld [vmem:[#allocation2 + $0x1a2] sm:$0x1]
    %v86 = vld [vmem:[#allocation2 + $0x1a3] sm:$0x1]
    %vm87 = vcmask 64512
    %v89 = vsel %vm87, %v30, 0
    %91 = vmatprep.subr.mxu0 0.0
    %92 = vmatpush1.msra.mxu0 %v34
    %93 = vmatprep.subr.mxu0 0.0
    %94 = vmatpush1.msra.mxu0 0.0
    %95 = vmatprep.subr.mxu0 0.0
    %96 = vmatpush1.msra.mxu0 0.0
    %97 = vmatprep.subr.mxu0 0.0
    %98 = vmatpush1.msra.mxu0 0.0
    %99 = vmatprep.subr.mxu0 0.0
    %100 = vmatpush1.msra.mxu0 0.0
    %101 = vmatprep.subr.mxu0 0.0
    %102 = vmatpush1.msra.mxu0 0.0
    %103 = vmatprep.subr.mxu0 0.0
    %104 = vmatpush1.msra.mxu0 0.0
    %105 = vmatprep.subr.mxu0 0.0
    %106 = vmatpush1.msra.mxu0 0.0
    %107 = vmatprep.subr.mxu0 0.0
    %108 = vmatpush1.msra.mxu0 0.0
    %109 = vmatprep.subr.mxu0 0.0
    %110 = vmatpush1.msra.mxu0 0.0
    %111 = vmatprep.subr.mxu0 0.0
    %112 = vmatpush1.msra.mxu0 0.0
    %113 = vmatprep.subr.mxu0 0.0
    %114 = vmatpush1.msra.mxu0 0.0
    %115 = vmatprep.subr.mxu0 0.0
    %116 = vmatpush1.msra.mxu0 0.0
    %117 = vmatprep.subr.mxu0 0.0
    %118 = vmatpush1.msra.mxu0 0.0
    %119 = vmatprep.subr.mxu0 0.0
    %120 = vmatpush1.msra.mxu0 0.0
    %121 = vmatprep.subr.mxu0 0.0
    %122 = vmatpush1.msra.mxu0 0.0
    %123 = vmatprep.subr.mxu0 0.0
    %124 = vmatpush1.msra.mxu0 0.0
    %125 = vmatprep.subr.mxu0 0.0
    %126 = vmatpush1.msra.mxu0 0.0
    %127 = vmatprep.subr.mxu0 0.0
    %128 = vmatpush1.msra.mxu0 0.0
    %129 = vmatprep.subr.mxu0 0.0
    %130 = vmatpush1.msra.mxu0 0.0
    %131 = vmatprep.subr.mxu0 0.0
    %132 = vmatpush1.msra.mxu0 0.0
    %133 = vmatprep.subr.mxu0 0.0
    %134 = vmatpush1.msra.mxu0 0.0
    %135 = vmatprep.subr.mxu0 0.0
    %136 = vmatpush1.msra.mxu0 0.0
    %137 = vmatprep.subr.mxu0 0.0
    %138 = vmatpush1.msra.mxu0 0.0
    %139 = vmatprep.subr.mxu0 0.0
    %140 = vmatpush1.msra.mxu0 0.0
    %141 = vmatprep.subr.mxu0 0.0
    %142 = vmatpush1.msra.mxu0 0.0
    %143 = vmatprep.subr.mxu0 0.0
    %144 = vmatpush1.msra.mxu0 0.0
    %145 = vmatprep.subr.mxu0 0.0
    %146 = vmatpush1.msra.mxu0 0.0
    %147 = vmatprep.subr.mxu0 0.0
    %148 = vmatpush1.msra.mxu0 0.0
    %149 = vmatprep.subr.mxu0 0.0
    %150 = vmatpush1.msra.mxu0 0.0
    %151 = vmatprep.subr.mxu0 0.0
    %152 = vmatpush1.msra.mxu0 0.0
    %153 = vmatprep.subr.mxu0 0.0
    %154 = vmatpush1.msra.mxu0 0.0
    %155 = vmatprep.mubr.f32.mxu0 0.0
    %156 = vmatmul.mubr.f32.gmra.mrb[0].mxu0 %v89
    %v157 = vpop.f32.mrb[0].mxu0
    %v158 = vadd.f32 0.0, %v157
    %v159 = vpop.f32.mrb[0].mxu0
    %160 = vdwg.mxu0
    %vm161 = vcmask 195584
    %v163 = vsel %vm161, %v29, 0
    %165 = vmatprep.subr.mxu0 0.0
    %166 = vmatpush1.msra.mxu0 %v31
    %167 = vmatprep.subr.mxu0 0.0
    %168 = vmatpush1.msra.mxu0 %v32
    %169 = vmatprep.subr.mxu0 0.0
    %170 = vmatpush1.msra.mxu0 %v33
    %171 = vmatprep.subr.mxu0 0.0
    %172 = vmatpush1.msra.mxu0 0.0
    %173 = vmatprep.subr.mxu0 0.0
    %174 = vmatpush1.msra.mxu0 0.0
    %175 = vmatprep.subr.mxu0 0.0
    %176 = vmatpush1.msra.mxu0 0.0
    %177 = vmatprep.subr.mxu0 0.0
    %178 = vmatpush1.msra.mxu0 0.0
    %179 = vmatprep.subr.mxu0 0.0
    %180 = vmatpush1.msra.mxu0 0.0
    %181 = vmatprep.subr.mxu0 0.0
    %182 = vmatpush1.msra.mxu0 0.0
    %183 = vmatprep.subr.mxu0 0.0
    %184 = vmatpush1.msra.mxu0 0.0
    %185 = vmatprep.subr.mxu0 0.0
    %186 = vmatpush1.msra.mxu0 0.0
    %187 = vmatprep.subr.mxu0 0.0
    %188 = vmatpush1.msra.mxu0 0.0
    %189 = vmatprep.subr.mxu0 0.0
    %190 = vmatpush1.msra.mxu0 0.0
    %191 = vmatprep.subr.mxu0 0.0
    %192 = vmatpush1.msra.mxu0 0.0
    %193 = vmatprep.subr.mxu0 0.0
    %194 = vmatpush1.msra.mxu0 0.0
    %195 = vmatprep.subr.mxu0 0.0
    %196 = vmatpush1.msra.mxu0 0.0
    %197 = vmatprep.subr.mxu0 0.0
    %198 = vmatpush1.msra.mxu0 0.0
    %199 = vmatprep.subr.mxu0 0.0
    %200 = vmatpush1.msra.mxu0 0.0
    %201 = vmatprep.subr.mxu0 0.0
    %202 = vmatpush1.msra.mxu0 0.0
    %203 = vmatprep.subr.mxu0 0.0
    %204 = vmatpush1.msra.mxu0 0.0
    %205 = vmatprep.subr.mxu0 0.0
    %206 = vmatpush1.msra.mxu0 0.0
    %207 = vmatprep.subr.mxu0 0.0
    %208 = vmatpush1.msra.mxu0 0.0
    %209 = vmatprep.subr.mxu0 0.0
    %210 = vmatpush1.msra.mxu0 0.0
    %211 = vmatprep.subr.mxu0 0.0
    %212 = vmatpush1.msra.mxu0 0.0
    %213 = vmatprep.subr.mxu0 0.0
    %214 = vmatpush1.msra.mxu0 0.0
    %215 = vmatprep.subr.mxu0 0.0
    %216 = vmatpush1.msra.mxu0 0.0
    %217 = vmatprep.subr.mxu0 0.0
    %218 = vmatpush1.msra.mxu0 0.0
    %219 = vmatprep.subr.mxu0 0.0
    %220 = vmatpush1.msra.mxu0 0.0
    %221 = vmatprep.subr.mxu0 0.0
    %222 = vmatpush1.msra.mxu0 0.0
    %223 = vmatprep.subr.mxu0 0.0
    %224 = vmatpush1.msra.mxu0 0.0
    %225 = vmatprep.subr.mxu0 0.0
    %226 = vmatpush1.msra.mxu0 0.0
    %227 = vmatprep.subr.mxu0 0.0
    %228 = vmatpush1.msra.mxu0 0.0
    %229 = vmatprep.mubr.f32.mxu0 0.0
    %230 = vmatmul.mubr.f32.gmra.mrb[0].mxu0 %v163
    %v231 = vpop.f32.mrb[0].mxu0
    %v232 = vadd.f32 %v158, %v231
    %v233 = vpop.f32.mrb[0].mxu0
    %234 = vdwg.mxu0
    %v235 = vlaneseq
    %v236 = vshrl.u32 %v235, 7
    %v237 = vsub.s32 0, %v236
    %v238 = vrot.slane %v83, %v237
    %v239 = vadd.f32 %v232, %v238
    %v240 = vmax.f32 %v239, 0.0
    %v241 = vlaneseq
    %v242 = vshrl.u32 %v241, 7
    %v243 = vsub.s32 0, %v242
    %v244 = vrot.slane %v84, %v243
    %245 = vmatprep.subr.mxu0 0.0
    %246 = vmatpush1.msra.mxu0 %v35
    %247 = vmatprep.subr.mxu0 0.0
    %248 = vmatpush1.msra.mxu0 %v36
    %249 = vmatprep.subr.mxu0 0.0
    %250 = vmatpush1.msra.mxu0 %v37
    %251 = vmatprep.subr.mxu0 0.0
    %252 = vmatpush1.msra.mxu0 %v38
    %253 = vmatprep.subr.mxu0 0.0
    %254 = vmatpush1.msra.mxu0 %v39
    %255 = vmatprep.subr.mxu0 0.0
    %256 = vmatpush1.msra.mxu0 %v40
    %257 = vmatprep.subr.mxu0 0.0
    %258 = vmatpush1.msra.mxu0 %v41
    %259 = vmatprep.subr.mxu0 0.0
    %260 = vmatpush1.msra.mxu0 %v42
    %261 = vmatprep.subr.mxu0 0.0
    %262 = vmatpush1.msra.mxu0 %v43
    %263 = vmatprep.subr.mxu0 0.0
    %264 = vmatpush1.msra.mxu0 %v44
    %265 = vmatprep.subr.mxu0 0.0
    %266 = vmatpush1.msra.mxu0 %v45
    %267 = vmatprep.subr.mxu0 0.0
    %268 = vmatpush1.msra.mxu0 %v46
    %269 = vmatprep.subr.mxu0 0.0
    %270 = vmatpush1.msra.mxu0 %v47
    %271 = vmatprep.subr.mxu0 0.0
    %272 = vmatpush1.msra.mxu0 %v48
    %273 = vmatprep.subr.mxu0 0.0
    %274 = vmatpush1.msra.mxu0 %v49
    %275 = vmatprep.subr.mxu0 0.0
    %276 = vmatpush1.msra.mxu0 %v50
    %277 = vmatprep.subr.mxu0 0.0
    %278 = vmatpush1.msra.mxu0 0.0
    %279 = vmatprep.subr.mxu0 0.0
    %280 = vmatpush1.msra.mxu0 0.0
    %281 = vmatprep.subr.mxu0 0.0
    %282 = vmatpush1.msra.mxu0 0.0
    %283 = vmatprep.subr.mxu0 0.0
    %284 = vmatpush1.msra.mxu0 0.0
    %285 = vmatprep.subr.mxu0 0.0
    %286 = vmatpush1.msra.mxu0 0.0
    %287 = vmatprep.subr.mxu0 0.0
    %288 = vmatpush1.msra.mxu0 0.0
    %289 = vmatprep.subr.mxu0 0.0
    %290 = vmatpush1.msra.mxu0 0.0
    %291 = vmatprep.subr.mxu0 0.0
    %292 = vmatpush1.msra.mxu0 0.0
    %293 = vmatprep.subr.mxu0 0.0
    %294 = vmatpush1.msra.mxu0 0.0
    %295 = vmatprep.subr.mxu0 0.0
    %296 = vmatpush1.msra.mxu0 0.0
    %297 = vmatprep.subr.mxu0 0.0
    %298 = vmatpush1.msra.mxu0 0.0
    %299 = vmatprep.subr.mxu0 0.0
    %300 = vmatpush1.msra.mxu0 0.0
    %301 = vmatprep.subr.mxu0 0.0
    %302 = vmatpush1.msra.mxu0 0.0
    %303 = vmatprep.subr.mxu0 0.0
    %304 = vmatpush1.msra.mxu0 0.0
    %305 = vmatprep.subr.mxu0 0.0
    %306 = vmatpush1.msra.mxu0 0.0
    %307 = vmatprep.subr.mxu0 0.0
    %308 = vmatpush1.msra.mxu0 0.0
    %309 = vmatprep.mubr.f32.mxu0 0.0
    %310 = vmatmul.mubr.f32.gmra.mrb[0].mxu0 %v240
    %v311 = vpop.f32.mrb[0].mxu0
    %v312 = vadd.f32 %v244, %v311
    %v313 = vpop.f32.mrb[0].mxu0
    %314 = vdwg.mxu0
    %v315 = vmax.f32 %v312, 0.0
    %v316 = vlaneseq
    %v317 = vshrl.u32 %v316, 7
    %v318 = vsub.s32 0, %v317
    %v319 = vrot.slane %v85, %v318
    %320 = vmatprep.subr.mxu0 0.0
    %321 = vmatpush1.msra.mxu0 %v51
    %322 = vmatprep.subr.mxu0 0.0
    %323 = vmatpush1.msra.mxu0 %v52
    %324 = vmatprep.subr.mxu0 0.0
    %325 = vmatpush1.msra.mxu0 %v53
    %326 = vmatprep.subr.mxu0 0.0
    %327 = vmatpush1.msra.mxu0 %v54
    %328 = vmatprep.subr.mxu0 0.0
    %329 = vmatpush1.msra.mxu0 %v55
    %330 = vmatprep.subr.mxu0 0.0
    %331 = vmatpush1.msra.mxu0 %v56
    %332 = vmatprep.subr.mxu0 0.0
    %333 = vmatpush1.msra.mxu0 %v57
    %334 = vmatprep.subr.mxu0 0.0
    %335 = vmatpush1.msra.mxu0 %v58
    %336 = vmatprep.subr.mxu0 0.0
    %337 = vmatpush1.msra.mxu0 %v59
    %338 = vmatprep.subr.mxu0 0.0
    %339 = vmatpush1.msra.mxu0 %v60
    %340 = vmatprep.subr.mxu0 0.0
    %341 = vmatpush1.msra.mxu0 %v61
    %342 = vmatprep.subr.mxu0 0.0
    %343 = vmatpush1.msra.mxu0 %v62
    %344 = vmatprep.subr.mxu0 0.0
    %345 = vmatpush1.msra.mxu0 %v63
    %346 = vmatprep.subr.mxu0 0.0
    %347 = vmatpush1.msra.mxu0 %v64
    %348 = vmatprep.subr.mxu0 0.0
    %349 = vmatpush1.msra.mxu0 %v65
    %350 = vmatprep.subr.mxu0 0.0
    %351 = vmatpush1.msra.mxu0 %v66
    %352 = vmatprep.subr.mxu0 0.0
    %353 = vmatpush1.msra.mxu0 0.0
    %354 = vmatprep.subr.mxu0 0.0
    %355 = vmatpush1.msra.mxu0 0.0
    %356 = vmatprep.subr.mxu0 0.0
    %357 = vmatpush1.msra.mxu0 0.0
    %358 = vmatprep.subr.mxu0 0.0
    %359 = vmatpush1.msra.mxu0 0.0
    %360 = vmatprep.subr.mxu0 0.0
    %361 = vmatpush1.msra.mxu0 0.0
    %362 = vmatprep.subr.mxu0 0.0
    %363 = vmatpush1.msra.mxu0 0.0
    %364 = vmatprep.subr.mxu0 0.0
    %365 = vmatpush1.msra.mxu0 0.0
    %366 = vmatprep.subr.mxu0 0.0
    %367 = vmatpush1.msra.mxu0 0.0
    %368 = vmatprep.subr.mxu0 0.0
    %369 = vmatpush1.msra.mxu0 0.0
    %370 = vmatprep.subr.mxu0 0.0
    %371 = vmatpush1.msra.mxu0 0.0
    %372 = vmatprep.subr.mxu0 0.0
    %373 = vmatpush1.msra.mxu0 0.0
    %374 = vmatprep.subr.mxu0 0.0
    %375 = vmatpush1.msra.mxu0 0.0
    %376 = vmatprep.subr.mxu0 0.0
    %377 = vmatpush1.msra.mxu0 0.0
    %378 = vmatprep.subr.mxu0 0.0
    %379 = vmatpush1.msra.mxu0 0.0
    %380 = vmatprep.subr.mxu0 0.0
    %381 = vmatpush1.msra.mxu0 0.0
    %382 = vmatprep.subr.mxu0 0.0
    %383 = vmatpush1.msra.mxu0 0.0
    %384 = vmatprep.mubr.f32.mxu0 0.0
    %385 = vmatmul.mubr.f32.gmra.mrb[0].mxu0 %v315
    %v386 = vpop.f32.mrb[0].mxu0
    %v387 = vadd.f32 %v319, %v386
    %v388 = vpop.f32.mrb[0].mxu0
    %389 = vdwg.mxu0
    %v390 = vmax.f32 %v387, 0.0
    %v391 = vlaneseq
    %v392 = vshrl.u32 %v391, 7
    %v393 = vsub.s32 0, %v392
    %v394 = vrot.slane %v86, %v393
    %395 = vmatprep.subr.mxu0 0.0
    %396 = vmatpush1.msra.mxu0 %v67
    %397 = vmatprep.subr.mxu0 0.0
    %398 = vmatpush1.msra.mxu0 %v68
    %399 = vmatprep.subr.mxu0 0.0
    %400 = vmatpush1.msra.mxu0 %v69
    %401 = vmatprep.subr.mxu0 0.0
    %402 = vmatpush1.msra.mxu0 %v70
    %403 = vmatprep.subr.mxu0 0.0
    %404 = vmatpush1.msra.mxu0 %v71
    %405 = vmatprep.subr.mxu0 0.0
    %406 = vmatpush1.msra.mxu0 %v72
    %407 = vmatprep.subr.mxu0 0.0
    %408 = vmatpush1.msra.mxu0 %v73
    %409 = vmatprep.subr.mxu0 0.0
    %410 = vmatpush1.msra.mxu0 %v74
    %411 = vmatprep.subr.mxu0 0.0
    %412 = vmatpush1.msra.mxu0 %v75
    %413 = vmatprep.subr.mxu0 0.0
    %414 = vmatpush1.msra.mxu0 %v76
    %415 = vmatprep.subr.mxu0 0.0
    %416 = vmatpush1.msra.mxu0 %v77
    %417 = vmatprep.subr.mxu0 0.0
    %418 = vmatpush1.msra.mxu0 %v78
    %419 = vmatprep.subr.mxu0 0.0
    %420 = vmatpush1.msra.mxu0 %v79
    %421 = vmatprep.subr.mxu0 0.0
    %422 = vmatpush1.msra.mxu0 %v80
    %423 = vmatprep.subr.mxu0 0.0
    %424 = vmatpush1.msra.mxu0 %v81
    %425 = vmatprep.subr.mxu0 0.0
    %426 = vmatpush1.msra.mxu0 %v82
    %427 = vmatprep.subr.mxu0 0.0
    %428 = vmatpush1.msra.mxu0 0.0
    %429 = vmatprep.subr.mxu0 0.0
    %430 = vmatpush1.msra.mxu0 0.0
    %431 = vmatprep.subr.mxu0 0.0
    %432 = vmatpush1.msra.mxu0 0.0
    %433 = vmatprep.subr.mxu0 0.0
    %434 = vmatpush1.msra.mxu0 0.0
    %435 = vmatprep.subr.mxu0 0.0
    %436 = vmatpush1.msra.mxu0 0.0
    %437 = vmatprep.subr.mxu0 0.0
    %438 = vmatpush1.msra.mxu0 0.0
    %439 = vmatprep.subr.mxu0 0.0
    %440 = vmatpush1.msra.mxu0 0.0
    %441 = vmatprep.subr.mxu0 0.0
    %442 = vmatpush1.msra.mxu0 0.0
    %443 = vmatprep.subr.mxu0 0.0
    %444 = vmatpush1.msra.mxu0 0.0
    %445 = vmatprep.subr.mxu0 0.0
    %446 = vmatpush1.msra.mxu0 0.0
    %447 = vmatprep.subr.mxu0 0.0
    %448 = vmatpush1.msra.mxu0 0.0
    %449 = vmatprep.subr.mxu0 0.0
    %450 = vmatpush1.msra.mxu0 0.0
    %451 = vmatprep.subr.mxu0 0.0
    %452 = vmatpush1.msra.mxu0 0.0
    %453 = vmatprep.subr.mxu0 0.0
    %454 = vmatpush1.msra.mxu0 0.0
    %455 = vmatprep.subr.mxu0 0.0
    %456 = vmatpush1.msra.mxu0 0.0
    %457 = vmatprep.subr.mxu0 0.0
    %458 = vmatpush1.msra.mxu0 0.0
    %459 = vmatprep.mubr.f32.mxu0 0.0
    %460 = vmatmul.mubr.f32.gmra.mrb[0].mxu0 %v390
    %v461 = vpop.f32.mrb[0].mxu0
    %v462 = vadd.f32 %v394, %v461
    %v463 = vpop.f32.mrb[0].mxu0
    %464 = vdwg.mxu0
    %465 = vst [vmem:[#allocation5] sm:$0xff] %v462
    // Predicated region
    $region18: #{_lambda_.1} parent=1 // pred_check
      _
    $region19: #{_lambda_.1} parent=1 // pred_check_branch
      %467 = sbr.rel (0) target = $region21
    $region20: #{_lambda_.1} parent=1 // pred_region
      %s469 = ssub.s32 128, 128
      %470 = vsyncadd [#allocation4], %s469
      %s472 = sshll.u32 [#allocation5], 4
      %s473 = int_to_ptr.vmem [resolvable:$true] %s472
      %475 = dma.vmem_to_hbm [thread:$0]  %s473, 128, %s3, [#allocation4]
    $region21: #{_lambda_.1} parent=1 // pred_fallthru
      _
    // Predicated region
    $region22: #{_lambda_.1} parent=1 // pred_check
      _
    $region23: #{_lambda_.1} parent=1 // pred_check_branch
      %477 = sbr.rel (0) target = $region25
    $region24: #{_lambda_.1} parent=1 // pred_region
      %478 = dma.done [#allocation4], 128
    $region25: #{_lambda_.1} parent=1 // pred_fallthru
      _
    %479 = vsyncpa [#allocation3], 1
    %480 = vsyncpa [#allocation4], 1

</llo_original>
